<compile_context>
chip_gen: v7x
topology: tpu7x:2x2x1
jax: 0.10.0
libtpu: 0.0.40
codegen_flags: <defaults>
</compile_context>

<pallas_src>
import jax
import jax.numpy as jnp
from jax.experimental import pallas as pl
from jax.experimental.pallas import tpu as pltpu


def _w_cheng_kernel(x_ref, w_ref, o_ref):
    # x_ref: (rows, cols) lane-dense tile of the flattened input
    # w_ref: (1, cols) weight row (resident across the batch grid axis)
    # (rows, cols) * (1, cols) broadcasts natively — no reshape/broadcast op per step.
    o_ref[...] = x_ref[...] * w_ref[...]


def w_cheng_forward(x, w_m, *, target_tile_bytes=2 * 1024 * 1024):
    """x: (B, C, D); w_m: (C, D) -> (B, C, D) in the promoted dtype (matches torch `x * w`)."""
    B, C, D = x.shape
    assert w_m.shape == (C, D), (w_m.shape, (C, D))

    # Match PyTorch type-promotion semantics for `x * w_m`.
    out_dtype = jnp.promote_types(x.dtype, w_m.dtype)
    CD = C * D
    itemsize = jnp.dtype(out_dtype).itemsize

    # Lane-dense 2D views: last axis is the flattened C*D extent.
    x2 = x.astype(out_dtype).reshape(B, CD)
    w2 = w_m.astype(out_dtype).reshape(1, CD)

    # Sublane multiple for this dtype (packed sub-32-bit dtypes need 16/32 rows).
    sublane = max(8, 32 // itemsize)

    row_bytes = CD * itemsize
    if row_bytes <= target_tile_bytes:
        # Whole flattened row fits in one tile: tile only over batch rows.
        cols = CD
        rows = target_tile_bytes // row_bytes
        if rows >= B:
            rows = B                                   # full-extent block
        else:
            rows = min(B, max(sublane, (rows // sublane) * sublane))
    else:
        # A single row is already bigger than the tile budget: also split the C*D axis
        # into 128-aligned column chunks (2-D grid).
        rows = min(B, sublane)
        cols = max(128, ((target_tile_bytes // (rows * itemsize)) // 128) * 128)
        cols = min(CD, cols)

    grid = (pl.cdiv(B, rows), pl.cdiv(CD, cols))

    # VMEM budget: x-in and out tiles double-buffered, plus the (double-buffered) weight row.
    tile_bytes = rows * cols * itemsize
    vmem_needed = 4 * tile_bytes + 4 * cols * itemsize
    vmem_limit = int(min(max(vmem_needed + (4 << 20), 16 << 20), 48 << 20))

    cost = pl.CostEstimate(
        flops=B * CD,
        transcendentals=0,
        bytes_accessed=2 * B * CD * itemsize + CD * itemsize,
    )

    out2 = pl.pallas_call(
        _w_cheng_kernel,
        out_shape=jax.ShapeDtypeStruct((B, CD), out_dtype),
        grid_spec=pltpu.PrefetchScalarGridSpec(
            num_scalar_prefetch=0,
            grid=grid,
            in_specs=[
                pl.BlockSpec((rows, cols), lambda i, j: (i, j)),
                # Same block index across the batch axis -> weight stays resident in VMEM.
                pl.BlockSpec((1, cols), lambda i, j: (0, j)),
            ],
            out_specs=pl.BlockSpec((rows, cols), lambda i, j: (i, j)),
        ),
        compiler_params=pltpu.CompilerParams(
            # Both grid axes are independent elementwise tiles -> megacore-shardable.
            dimension_semantics=("parallel", "parallel"),
            vmem_limit_bytes=vmem_limit,
        ),
        cost_estimate=cost,
    )(x2, w2)

    return out2.reshape(B, C, D)


if __name__ == "__main__":
    key = jax.random.PRNGKey(0)

    # Small shapes consistent with the module: batch=2, c=4, dime=32.
    B, C, D = 2, 4, 32
    x = jax.random.normal(key, (B, C, D), dtype=jnp.float32)
    w_m = jnp.ones((C, D), dtype=jnp.float32)  # matches torch.ones(c, dime) init

    out = jax.block_until_ready(w_cheng_forward(x, w_m))
    ref = x * w_m[None, :, :]
    assert out.shape == (B, C, D)
    assert jnp.allclose(out, ref, atol=1e-6), "mismatch vs reference (small case)"

    # Multi-step batch-tiled grid path.
    B2 = 64
    kx, kw = jax.random.split(jax.random.PRNGKey(0))
    x_big = jax.random.normal(kx, (B2, C, D), dtype=jnp.float32)
    w_big = jax.random.normal(kw, (C, D), dtype=jnp.float32)
    out_big = jax.block_until_ready(
        w_cheng_forward(x_big, w_big, target_tile_bytes=4096)
    )
    ref_big = x_big * w_big[None, :, :]
    assert jnp.allclose(out_big, ref_big, atol=1e-6), "mismatch vs reference (tiled batch)"

    # Column-split (2-D grid) path: one flattened row exceeds the tile budget.
    B3, C3, D3 = 16, 4, 512
    kx3, kw3 = jax.random.split(jax.random.PRNGKey(0), 2)
    x_wide = jax.random.normal(kx3, (B3, C3, D3), dtype=jnp.float32)
    w_wide = jax.random.normal(kw3, (C3, D3), dtype=jnp.float32)
    out_wide = jax.block_until_ready(
        w_cheng_forward(x_wide, w_wide, target_tile_bytes=4096)
    )
    ref_wide = x_wide * w_wide[None, :, :]
    assert jnp.allclose(out_wide, ref_wide, atol=1e-6), "mismatch vs reference (col-split)"

    print("KERNEL_OK")
</pallas_src>

<mosaic_0001>
module attributes {stable_mosaic.version = 11 : i64} {
  func.func @_w_cheng_kernel(%arg0: i32, %arg1: i32, %arg2: memref<2x128xf32, #tpu.memory_space<vmem>>, %arg3: memref<1x128xf32, #tpu.memory_space<vmem>>, %arg4: memref<2x128xf32, #tpu.memory_space<vmem>>) attributes {dimension_semantics = [#tpu.dimension_semantics<parallel>, #tpu.dimension_semantics<parallel>], iteration_bounds = array<i64: 1, 1>, scalar_prefetch = 0 : i64, scratch_operands = 0 : i64, tpu.core_type = #tpu.core_type<tc>, window_params = [{transform_indices = @transform_0, window_bounds = array<i64: 2, 128>}, {transform_indices = @transform_1, window_bounds = array<i64: 1, 128>}, {transform_indices = @transform_2, window_bounds = array<i64: 2, 128>}]} {
    %c0 = arith.constant 0 : index
    %c0_0 = arith.constant 0 : index
    %0 = vector.load %arg2[%c0, %c0_0] : memref<2x128xf32, #tpu.memory_space<vmem>>, vector<2x128xf32>
    %c0_1 = arith.constant 0 : index
    %c0_2 = arith.constant 0 : index
    %1 = vector.load %arg3[%c0_1, %c0_2] : memref<1x128xf32, #tpu.memory_space<vmem>>, vector<1x128xf32>
    %2 = vector.broadcast %1 : vector<1x128xf32> to vector<2x128xf32>
    %3 = arith.mulf %0, %2 : vector<2x128xf32>
    %c0_3 = arith.constant 0 : index
    %c0_4 = arith.constant 0 : index
    %4 = vector.load %arg4[%c0_3, %c0_4] : memref<2x128xf32, #tpu.memory_space<vmem>>, vector<2x128xf32>
    tpu.vector_store %arg4[%c0_3, %c0_4], %3 {strides = array<i32>} : memref<2x128xf32, #tpu.memory_space<vmem>>, vector<2x128xf32>,
    return
  }
  func.func @transform_0(%arg0: i32, %arg1: i32) -> (i32, i32) {
    %c0_i32 = arith.constant 0 : i32
    return %arg0, %arg1 : i32, i32
  }
  func.func @transform_1(%arg0: i32, %arg1: i32) -> (i32, i32) {
    %c0_i32 = arith.constant 0 : i32
    %c0_i32_0 = arith.constant 0 : i32
    return %c0_i32, %arg1 : i32, i32
  }
  func.func @transform_2(%arg0: i32, %arg1: i32) -> (i32, i32) {
    %c0_i32 = arith.constant 0 : i32
    return %arg0, %arg1 : i32, i32
  }
}

</mosaic_0001>

<llo_original>
// kernel: tpu_custom_call.1
$region0: #{tpu_custom_call.1}
  #allocation0 [shape = 'u32[]', space=smem, size = 0x4, offset = 0x4, fixed_abs, tag = 'smem constant byte address 0x4 - core index']
  #allocation1 [shape = 'u32[144,128]{1,0:T(1,128)}', space=vmem, size = 0x12000, scoped, tag = 'internal scratch']
  %s0 = inlined_call_operand.hbm [shape: f32[2,128], index: 0, kind: input, shape index: {}]
  %s1 = inlined_call_operand.vmem [shape: f32[1,128], index: 1, kind: input, shape index: {}]
  %s2 = inlined_call_operand.hbm [shape: f32[2,128], index: 2, kind: output, shape index: {}]
  %s3 = sld [smem:[#allocation0]]
  $region22: #{tpu_custom_call.1} parent=0
    _
  %s5 = ssub.s32 1, %s3
  %s6 = scalar_select 0, %s5, %s3
  $region1: #{tpu_custom_call.1} parent=0
    #allocation2 [shape = 'u8[1024]{0}', space=vmem, size = 0x400, scoped, tag = 'input window, operand 0, single buffered']
    #allocation3 [shape = 's32[1]{0}', space=sflag, size = 0x4, scoped, tag = 'scoped memory for tpu_custom_call.1']
    #allocation4 [shape = 's32[1]{0}', space=sflag, size = 0x4, scoped, tag = 'scoped memory for tpu_custom_call.1']
    #allocation5 [shape = 'u8[1024]{0}', space=vmem, size = 0x400, scoped, tag = 'output window, operand 0, single buffered']
    %7 = vsyncpa [#allocation3], 0
    %8 = vsyncpa [#allocation4], 0
    // Predicated region
    $region2: #{tpu_custom_call.1} parent=1 // pred_check
      _
    $region3: #{tpu_custom_call.1} parent=1 // pred_check_branch
      %10 = sbr.rel (0) target = $region5
    $region4: #{tpu_custom_call.1} parent=1 // pred_region
      %s12 = ssub.s32 32, 32
      %13 = vsyncadd [#allocation3], %s12
      %s15 = sshll.u32 [#allocation2], 4
      %s16 = int_to_ptr.vmem [resolvable:$true] %s15
      %18 = dma.hbm_to_vmem [thread:$0]  %s0, 32, %s16, [#allocation3]
    $region5: #{tpu_custom_call.1} parent=1 // pred_fallthru
      _
    // Predicated region
    $region6: #{tpu_custom_call.1} parent=1 // pred_check
      _
    $region7: #{tpu_custom_call.1} parent=1 // pred_check_branch
      %20 = sbr.rel (0) target = $region9
    $region8: #{tpu_custom_call.1} parent=1 // pred_region
      _
    $region9: #{tpu_custom_call.1} parent=1 // pred_fallthru
      _
    // Predicated region
    $region10: #{tpu_custom_call.1} parent=1 // pred_check
      _
    $region11: #{tpu_custom_call.1} parent=1 // pred_check_branch
      %22 = sbr.rel (0) target = $region13
    $region12: #{tpu_custom_call.1} parent=1 // pred_region
      %23 = dma.done [#allocation3], 32
    $region13: #{tpu_custom_call.1} parent=1 // pred_fallthru
      _
    %v24 = vld [vmem:[#allocation2] sm:$0x3]
    %v25 = vld [vmem:[%s1] sm:$0x1]
    %v27 = vlaneseq
    %v28 = vshrl.u32 %v27, 7
    %v29 = vsub.s32 0, %v28
    %v30 = vrot.slane %v25, %v29
    %v32 = vmul.f32 %v24, %v30
    %33 = vst [vmem:[#allocation5] sm:$0x3] %v32
    // Predicated region
    $region14: #{tpu_custom_call.1} parent=1 // pred_check
      _
    $region15: #{tpu_custom_call.1} parent=1 // pred_check_branch
      %35 = sbr.rel (0) target = $region17
    $region16: #{tpu_custom_call.1} parent=1 // pred_region
      %s37 = ssub.s32 32, 32
      %38 = vsyncadd [#allocation4], %s37
      %s40 = sshll.u32 [#allocation5], 4
      %s41 = int_to_ptr.vmem [resolvable:$true] %s40
      %43 = dma.vmem_to_hbm [thread:$0]  %s41, 32, %s2, [#allocation4]
    $region17: #{tpu_custom_call.1} parent=1 // pred_fallthru
      _
    // Predicated region
    $region18: #{tpu_custom_call.1} parent=1 // pred_check
      _
    $region19: #{tpu_custom_call.1} parent=1 // pred_check_branch
      %45 = sbr.rel (0) target = $region21
    $region20: #{tpu_custom_call.1} parent=1 // pred_region
      %46 = dma.done [#allocation4], 32
    $region21: #{tpu_custom_call.1} parent=1 // pred_fallthru
      _
    %47 = vsyncpa [#allocation3], 1
    %48 = vsyncpa [#allocation4], 1

</llo_original>
